<compile_context>
chip_gen: v6e
topology: v6e:2x2x1
jax: 0.10.0
libtpu: 0.0.40
codegen_flags: <defaults>
</compile_context>

<pallas_src>
import jax
import jax.numpy as jnp
from jax.experimental import pallas as pl
from jax.experimental.pallas import tpu as pltpu


# ----------------------------------------------------------------------------
# Kernel A: spatial matmul + grouped (depthwise) temporal conv1d + softplus
#           (transposed layout: time on lanes; valid columns only are stored)
# ----------------------------------------------------------------------------
def st_conv_kernel(x_ref, wsp_t_ref, wt_ref, rates_ref):
    # x_ref:     (1, T, K2)    one batch element, native (time, pixels) layout
    # wsp_t_ref: (N,  K2)      spatial kernels, transposed
    # wt_ref:    (N,  L)       temporal kernels (torch layout)
    # rates_ref: (1, N, T_out) softplus rates, time on lanes (lane-dense)
    xb = x_ref[0]                                   # (T, K2)
    wsp_t = wsp_t_ref[...]                          # (N, K2)

    # s[n, t] = sum_k spatial_kernels[k, n] * x[t, k]   -> (N, T)
    s = jnp.einsum('nk,tk->nt', wsp_t, xb, preferred_element_type=jnp.float32)

    wt = wt_ref[...]                                # (N, L)
    L = wt.shape[1]
    T = s.shape[1]
    T_out = T - L + 1

    # Depthwise "valid" cross-correlation along time (== F.conv1d, groups=N):
    #   acc[n, t] = sum_l s[n, t + l] * wt[n, l]
    # Each tap is an XLU lane rotate (free slot next to the VPU FMAs).  The
    # wrap-around columns only land in t >= T_out, which are sliced away
    # below, and the per-batch grid block means wraps never cross batches.
    acc = s * wt[:, 0:1]
    for l in range(1, L):                           # static unroll, L small
        acc = acc + pltpu.roll(s, shift=T - l, axis=1) * wt[:, l:l + 1]

    # numerically stable softplus == F.softplus(beta=1)
    rates_ref[...] = jnp.logaddexp(acc[:, :T_out], 0.0)[None]


# ----------------------------------------------------------------------------
# Kernel B: fused noise-add + abs-sum (mean firing rate) + readout matmul
#           (transposed layout: time on lanes)
# ----------------------------------------------------------------------------
def readout_kernel(rates_ref, noise_ref, wn_t_ref, out_ref, abssum_ref):
    # rates_ref, noise_ref: (1, N, T_out)
    # wn_t_ref:             (K2, N)       neuron weights, transposed
    # out_ref:              (1, K2, T_out)
    # abssum_ref:           (1, 1, 1)     per-batch sum |rates + noise|
    y = rates_ref[0] + noise_ref[0]                 # fused noise add, (N, T_out)
    out_ref[...] = jnp.dot(wn_t_ref[...], y,
                           preferred_element_type=jnp.float32)[None]
    abssum_ref[...] = jnp.sum(jnp.abs(y)).reshape(1, 1, 1)


# ----------------------------------------------------------------------------
# Wrapper
# ----------------------------------------------------------------------------
def encoder_forward(x, spatial_kernels, temporal_kernels, neuron_weights, noise_key):
    """x: (B, T, H, W) float32.  Returns ((B, T_out, K, K), mean_fr)."""
    B, T, H, W = x.shape
    K2, N = spatial_kernels.shape
    assert H * W == K2, "spatial dims must flatten to kernel_size**2"
    L = temporal_kernels.shape[1]
    T_out = T - L + 1

    x3 = x.reshape(B, T, K2)
    wsp_t = spatial_kernels.T                       # (N, K2)  tiny
    wn_t = neuron_weights.T                         # (K2, N)  tiny

    cparams = pltpu.CompilerParams(
        dimension_semantics=("parallel",),          # batch sharded across TCs
        vmem_limit_bytes=32 * 1024 * 1024,          # safe on v5e/v6e/v7x
    )

    # ---- kernel A: spatial proj + temporal depthwise conv + softplus -------
    # Stores only the T_out valid columns per batch -> no wrapper-side slice.
    rates_t = pl.pallas_call(
        st_conv_kernel,
        grid=(B,),
        out_shape=jax.ShapeDtypeStruct((B, N, T_out), jnp.float32),
        in_specs=[
            pl.BlockSpec((1, T, K2), lambda b: (b, 0, 0)),
            pl.BlockSpec((N, K2), lambda b: (0, 0)),
            pl.BlockSpec((N, L), lambda b: (0, 0)),
        ],
        out_specs=pl.BlockSpec((1, N, T_out), lambda b: (b, 0, 0)),
        compiler_params=cparams,
    )(x3, wsp_t, temporal_kernels)

    # ---- Poisson noise (plain JAX; stochastic op) ---------------------------
    noise = jax.random.poisson(noise_key, rates_t).astype(jnp.float32)

    # ---- kernel B: noise add + mean firing rate + readout matmul ------------
    out_t, abssum = pl.pallas_call(
        readout_kernel,
        grid=(B,),
        out_shape=(
            jax.ShapeDtypeStruct((B, K2, T_out), jnp.float32),
            jax.ShapeDtypeStruct((B, 1, 1), jnp.float32),
        ),
        in_specs=[
            pl.BlockSpec((1, N, T_out), lambda b: (b, 0, 0)),
            pl.BlockSpec((1, N, T_out), lambda b: (b, 0, 0)),
            pl.BlockSpec((K2, N), lambda b: (0, 0)),
        ],
        out_specs=(
            pl.BlockSpec((1, K2, T_out), lambda b: (b, 0, 0)),
            pl.BlockSpec((1, 1, 1), lambda b: (b, 0, 0)),
        ),
        compiler_params=cparams,
    )(rates_t, noise, wn_t)

    mean_fr = jnp.sum(abssum) / (B * N * T_out)

    # layout plumbing back to the PyTorch output convention
    K = int(round(K2 ** 0.5))
    out = jnp.transpose(out_t, (0, 2, 1)).reshape(B, T_out, K, K)
    return out, mean_fr


if __name__ == "__main__":
    # Small, forward-consistent shapes
    spatial_kernel_size = 4        # K -> K2 = 16
    temporal_kernel_length = 4     # L
    n_kernels = 8                  # N
    B, T = 2, 16
    K2 = spatial_kernel_size ** 2

    key = jax.random.PRNGKey(0)
    k_x, k_sp, k_tp, k_nw, k_noise = jax.random.split(key, 5)

    # Deterministic parameter init (kaiming-normal-like scaling)
    spatial_kernels = (jax.random.normal(k_sp, (K2, n_kernels), jnp.float32)
                       * (2.0 / K2) ** 0.5)
    temporal_kernels = (jax.random.normal(k_tp, (n_kernels, temporal_kernel_length),
                                          jnp.float32)
                        * (2.0 / n_kernels) ** 0.5)
    neuron_weights = (jax.random.normal(k_nw, (n_kernels, K2), jnp.float32)
                      * (2.0 / n_kernels) ** 0.5)
    # softplus_params exists in the module but is unused in forward().

    x = jax.random.normal(k_x, (B, T, spatial_kernel_size, spatial_kernel_size),
                          jnp.float32)

    fwd = jax.jit(encoder_forward)
    out, mean_fr = fwd(x, spatial_kernels, temporal_kernels, neuron_weights, k_noise)
    jax.block_until_ready((out, mean_fr))

    T_out = T - temporal_kernel_length + 1
    assert out.shape == (B, T_out, spatial_kernel_size, spatial_kernel_size)
    assert mean_fr.shape == ()
    print("KERNEL_OK")
</pallas_src>

<mosaic_0001>
module attributes {stable_mosaic.version = 11 : i64} {
  func.func @st_conv_kernel(%arg0: i32, %arg1: memref<1x16x16xf32, #tpu.memory_space<vmem>>, %arg2: memref<8x16xf32, #tpu.memory_space<vmem>>, %arg3: memref<8x4xf32, #tpu.memory_space<vmem>>, %arg4: memref<1x8x13xf32, #tpu.memory_space<vmem>>) attributes {dimension_semantics = [#tpu.dimension_semantics<parallel>], iteration_bounds = array<i64: 2>, scalar_prefetch = 0 : i64, scratch_operands = 0 : i64, tpu.core_type = #tpu.core_type<tc>, window_params = [{transform_indices = @transform_0, window_bounds = array<i64: 1, 16, 16>}, {pipeline_mode = #tpu.pipeline_mode<synchronous>, transform_indices = @transform_1, window_bounds = array<i64: 8, 16>}, {pipeline_mode = #tpu.pipeline_mode<synchronous>, transform_indices = @transform_2, window_bounds = array<i64: 8, 4>}, {transform_indices = @transform_3, window_bounds = array<i64: 1, 8, 13>}]} {
    %c0 = arith.constant 0 : index
    %c0_0 = arith.constant 0 : index
    %c0_1 = arith.constant 0 : index
    %0 = vector.load %arg1[%c0, %c0_0, %c0_1] : memref<1x16x16xf32, #tpu.memory_space<vmem>>, vector<1x16x16xf32>
    %1 = vector.shape_cast %0 : vector<1x16x16xf32> to vector<16x16xf32>
    %c0_2 = arith.constant 0 : index
    %c0_3 = arith.constant 0 : index
    %2 = vector.load %arg2[%c0_2, %c0_3] : memref<8x16xf32, #tpu.memory_space<vmem>>, vector<8x16xf32>
    "tpu.trace_start"() <{level = 10 : i32, message = "nk,tk->nt"}> : () -> ()
    %cst = arith.constant dense<0.000000e+00> : vector<8x16xf32>
    %3 = tpu.matmul %2, %1, %cst {dimension_numbers = #tpu.dot_dimension_numbers<[1], [1], [0], [0], [0, 0, 1, 0], [], []>} : vector<8x16xf32>, vector<16x16xf32>, vector<8x16xf32> -> vector<8x16xf32>
    "tpu.trace_stop"() : () -> ()
    %c0_4 = arith.constant 0 : index
    %c0_5 = arith.constant 0 : index
    %4 = vector.load %arg3[%c0_4, %c0_5] : memref<8x4xf32, #tpu.memory_space<vmem>>, vector<8x4xf32>
    %5 = vector.extract_strided_slice %4 {offsets = [0, 0], sizes = [8, 1], strides = [1, 1]} : vector<8x4xf32> to vector<8x1xf32>
    %6 = vector.broadcast %5 : vector<8x1xf32> to vector<8x16xf32>
    %7 = arith.mulf %3, %6 : vector<8x16xf32>
    %c15_i32 = arith.constant 15 : i32
    %8 = tpu.dynamic_rotate %3 by %c15_i32 dim 1 : vector<8x16xf32>, i32 -> vector<8x16xf32>
    %9 = vector.extract_strided_slice %4 {offsets = [0, 1], sizes = [8, 1], strides = [1, 1]} : vector<8x4xf32> to vector<8x1xf32>
    %10 = vector.broadcast %9 : vector<8x1xf32> to vector<8x16xf32>
    %11 = arith.mulf %8, %10 : vector<8x16xf32>
    %12 = arith.addf %7, %11 : vector<8x16xf32>
    %c14_i32 = arith.constant 14 : i32
    %13 = tpu.dynamic_rotate %3 by %c14_i32 dim 1 : vector<8x16xf32>, i32 -> vector<8x16xf32>
    %14 = vector.extract_strided_slice %4 {offsets = [0, 2], sizes = [8, 1], strides = [1, 1]} : vector<8x4xf32> to vector<8x1xf32>
    %15 = vector.broadcast %14 : vector<8x1xf32> to vector<8x16xf32>
    %16 = arith.mulf %13, %15 : vector<8x16xf32>
    %17 = arith.addf %12, %16 : vector<8x16xf32>
    %c13_i32 = arith.constant 13 : i32
    %18 = tpu.dynamic_rotate %3 by %c13_i32 dim 1 : vector<8x16xf32>, i32 -> vector<8x16xf32>
    %19 = vector.extract_strided_slice %4 {offsets = [0, 3], sizes = [8, 1], strides = [1, 1]} : vector<8x4xf32> to vector<8x1xf32>
    %20 = vector.broadcast %19 : vector<8x1xf32> to vector<8x16xf32>
    %21 = arith.mulf %18, %20 : vector<8x16xf32>
    %22 = arith.addf %17, %21 : vector<8x16xf32>
    %23 = vector.extract_strided_slice %22 {offsets = [0, 0], sizes = [8, 13], strides = [1, 1]} : vector<8x16xf32> to vector<8x13xf32>
    %cst_6 = arith.constant 0.000000e+00 : f32
    %24 = vector.broadcast %cst_6 : f32 to vector<8x13xf32>
    %25 = arith.maximumf %23, %24 : vector<8x13xf32>
    %26 = vector.broadcast %cst_6 : f32 to vector<8x13xf32>
    %27 = arith.subf %23, %26 : vector<8x13xf32>
    %28 = arith.cmpf one, %27, %27 : vector<8x13xf32>
    %29 = vector.broadcast %cst_6 : f32 to vector<8x13xf32>
    %30 = arith.addf %23, %29 : vector<8x13xf32>
    %31 = math.absf %27 : vector<8x13xf32>
    %cst_7 = arith.constant 0.000000e+00 : f32
    %32 = vector.broadcast %cst_7 : f32 to vector<8x13xf32>
    %33 = arith.subf %32, %31 : vector<8x13xf32>
    %34 = math.exp %33 : vector<8x13xf32>
    %35 = math.log1p %34 : vector<8x13xf32>
    %36 = arith.addf %25, %35 : vector<8x13xf32>
    %37 = arith.select %28, %30, %36 : vector<8x13xi1>, vector<8x13xf32>
    %38 = vector.shape_cast %37 : vector<8x13xf32> to vector<1x8x13xf32>
    %c0_8 = arith.constant 0 : index
    %c0_9 = arith.constant 0 : index
    %c0_10 = arith.constant 0 : index
    %39 = vector.load %arg4[%c0_8, %c0_9, %c0_10] : memref<1x8x13xf32, #tpu.memory_space<vmem>>, vector<1x8x13xf32>
    tpu.vector_store %arg4[%c0_8, %c0_9, %c0_10], %38 {strides = array<i32>} : memref<1x8x13xf32, #tpu.memory_space<vmem>>, vector<1x8x13xf32>,
    return
  }
  func.func @transform_0(%arg0: i32) -> (i32, i32, i32) {
    %c0_i32 = arith.constant 0 : i32
    %c0_i32_0 = arith.constant 0 : i32
    %c0_i32_1 = arith.constant 0 : i32
    return %arg0, %c0_i32, %c0_i32_0 : i32, i32, i32
  }
  func.func @transform_1(%arg0: i32) -> (i32, i32) {
    %c0_i32 = arith.constant 0 : i32
    %c0_i32_0 = arith.constant 0 : i32
    %c0_i32_1 = arith.constant 0 : i32
    return %c0_i32, %c0_i32_0 : i32, i32
  }
  func.func @transform_2(%arg0: i32) -> (i32, i32) {
    %c0_i32 = arith.constant 0 : i32
    %c0_i32_0 = arith.constant 0 : i32
    %c0_i32_1 = arith.constant 0 : i32
    return %c0_i32, %c0_i32_0 : i32, i32
  }
  func.func @transform_3(%arg0: i32) -> (i32, i32, i32) {
    %c0_i32 = arith.constant 0 : i32
    %c0_i32_0 = arith.constant 0 : i32
    %c0_i32_1 = arith.constant 0 : i32
    return %arg0, %c0_i32, %c0_i32_0 : i32, i32, i32
  }
}

module attributes {stable_mosaic.version = 11 : i64} {
  func.func @readout_kernel(%arg0: i32, %arg1: memref<1x8x13xf32, #tpu.memory_space<vmem>>, %arg2: memref<1x8x13xf32, #tpu.memory_space<vmem>>, %arg3: memref<16x8xf32, #tpu.memory_space<vmem>>, %arg4: memref<1x16x13xf32, #tpu.memory_space<vmem>>, %arg5: memref<1x1x1xf32, #tpu.memory_space<vmem>>) attributes {dimension_semantics = [#tpu.dimension_semantics<parallel>], iteration_bounds = array<i64: 2>, scalar_prefetch = 0 : i64, scratch_operands = 0 : i64, tpu.core_type = #tpu.core_type<tc>, window_params = [{transform_indices = @transform_0, window_bounds = array<i64: 1, 8, 13>}, {transform_indices = @transform_1, window_bounds = array<i64: 1, 8, 13>}, {pipeline_mode = #tpu.pipeline_mode<synchronous>, transform_indices = @transform_2, window_bounds = array<i64: 16, 8>}, {transform_indices = @transform_3, window_bounds = array<i64: 1, 16, 13>}, {transform_indices = @transform_4, window_bounds = array<i64: 1, 1, 1>}]} {
    %c0 = arith.constant 0 : index
    %c0_0 = arith.constant 0 : index
    %c0_1 = arith.constant 0 : index
    %0 = vector.load %arg1[%c0, %c0_0, %c0_1] : memref<1x8x13xf32, #tpu.memory_space<vmem>>, vector<1x8x13xf32>
    %1 = vector.shape_cast %0 : vector<1x8x13xf32> to vector<8x13xf32>
    %c0_2 = arith.constant 0 : index
    %c0_3 = arith.constant 0 : index
    %c0_4 = arith.constant 0 : index
    %2 = vector.load %arg2[%c0_2, %c0_3, %c0_4] : memref<1x8x13xf32, #tpu.memory_space<vmem>>, vector<1x8x13xf32>
    %3 = vector.shape_cast %2 : vector<1x8x13xf32> to vector<8x13xf32>
    %4 = arith.addf %1, %3 : vector<8x13xf32>
    %c0_5 = arith.constant 0 : index
    %c0_6 = arith.constant 0 : index
    %5 = vector.load %arg3[%c0_5, %c0_6] : memref<16x8xf32, #tpu.memory_space<vmem>>, vector<16x8xf32>
    %cst = arith.constant dense<0.000000e+00> : vector<16x13xf32>
    %6 = tpu.matmul %5, %4, %cst {dimension_numbers = #tpu.dot_dimension_numbers<[1], [0], [0], [1], [0, 0, 1, 1], [], []>} : vector<16x8xf32>, vector<8x13xf32>, vector<16x13xf32> -> vector<16x13xf32>
    %7 = vector.shape_cast %6 : vector<16x13xf32> to vector<1x16x13xf32>
    %c0_7 = arith.constant 0 : index
    %c0_8 = arith.constant 0 : index
    %c0_9 = arith.constant 0 : index
    %8 = vector.load %arg4[%c0_7, %c0_8, %c0_9] : memref<1x16x13xf32, #tpu.memory_space<vmem>>, vector<1x16x13xf32>
    tpu.vector_store %arg4[%c0_7, %c0_8, %c0_9], %7 {strides = array<i32>} : memref<1x16x13xf32, #tpu.memory_space<vmem>>, vector<1x16x13xf32>,
    %9 = math.absf %4 : vector<8x13xf32>
    %10 = vector.shape_cast %9 : vector<8x13xf32> to vector<1x8x13xf32>
    %cst_10 = arith.constant dense<0.000000e+00> : vector<1xf32>
    %11 = vector.multi_reduction <add>, %10, %cst_10 [1, 2] : vector<1x8x13xf32> to vector<1xf32>
    %12 = vector.shape_cast %11 : vector<1xf32> to vector<1x1x1xf32>
    %13 = vector.extract %12[0, 0, 0] : f32 from vector<1x1x1xf32>
    %14 = vector.broadcast %13 : f32 to vector<1x1x1xf32>
    %c0_11 = arith.constant 0 : index
    %c0_12 = arith.constant 0 : index
    %c0_13 = arith.constant 0 : index
    %15 = vector.load %arg5[%c0_11, %c0_12, %c0_13] : memref<1x1x1xf32, #tpu.memory_space<vmem>>, vector<1x1x1xf32>
    tpu.vector_store %arg5[%c0_11, %c0_12, %c0_13], %14 {strides = array<i32>} : memref<1x1x1xf32, #tpu.memory_space<vmem>>, vector<1x1x1xf32>,
    return
  }
  func.func @transform_0(%arg0: i32) -> (i32, i32, i32) {
    %c0_i32 = arith.constant 0 : i32
    %c0_i32_0 = arith.constant 0 : i32
    %c0_i32_1 = arith.constant 0 : i32
    return %arg0, %c0_i32, %c0_i32_0 : i32, i32, i32
  }
  func.func @transform_1(%arg0: i32) -> (i32, i32, i32) {
    %c0_i32 = arith.constant 0 : i32
    %c0_i32_0 = arith.constant 0 : i32
    %c0_i32_1 = arith.constant 0 : i32
    return %arg0, %c0_i32, %c0_i32_0 : i32, i32, i32
  }
  func.func @transform_2(%arg0: i32) -> (i32, i32) {
    %c0_i32 = arith.constant 0 : i32
    %c0_i32_0 = arith.constant 0 : i32
    %c0_i32_1 = arith.constant 0 : i32
    return %c0_i32, %c0_i32_0 : i32, i32
  }
  func.func @transform_3(%arg0: i32) -> (i32, i32, i32) {
    %c0_i32 = arith.constant 0 : i32
    %c0_i32_0 = arith.constant 0 : i32
    %c0_i32_1 = arith.constant 0 : i32
    return %arg0, %c0_i32, %c0_i32_0 : i32, i32, i32
  }
  func.func @transform_4(%arg0: i32) -> (i32, i32, i32) {
    %c0_i32 = arith.constant 0 : i32
    %c0_i32_0 = arith.constant 0 : i32
    %c0_i32_1 = arith.constant 0 : i32
    return %arg0, %c0_i32, %c0_i32_0 : i32, i32, i32
  }
}

</mosaic_0001>

<llo_original>
// kernel: encoder_forward.2
$region0: #{encoder_forward.2}
  #allocation0 [shape = 'u32[]', space=smem, size = 0x4, offset = 0x4, fixed_abs, tag = 'smem constant byte address 0x4 - core index']
  #allocation1 [shape = 'u32[144,128]{1,0:T(1,128)}', space=vmem, size = 0x12000, scoped, tag = 'internal scratch']
  %s0 = inlined_call_operand.vmem [shape: f32[2,16,16], index: 0, kind: input, shape index: {}]
  %s1 = inlined_call_operand.vmem [shape: f32[8,16], index: 1, kind: input, shape index: {}]
  %s2 = inlined_call_operand.vmem [shape: f32[8,4], index: 2, kind: input, shape index: {}]
  %s3 = inlined_call_operand.vmem [shape: f32[2,8,13], index: 3, kind: output, shape index: {}]
  %s4 = sld [smem:[#allocation0]]
  $region45: #{encoder_forward.2} parent=0
    _
  %s6 = ssub.s32 1, %s4
  %s7 = scalar_select 0, %s6, %s4
  loop: start=0, step=1, limit=4
  $region2: #{encoder_forward.2} parent=0 // loop_pre_header
    _
  $region3: #{encoder_forward.2} parent=0 // loop_header
    %s9 = sphi 0, %s13
    %p10 = scmp.ge.s32.totalorder %s9, 4
    %s19 = sphi 0, %s21
    %s22 = sphi 0, %s19
    %s23 = sphi 0, %s22
    %s39 = sphi 0, %s23
    %s43 = sphi 0, %s43
    %s45 = sphi 0, %s43
    %s46 = sphi 0, %s45
    %s60 = sphi 0, %s46
    %s64 = sphi 0, %s64
    %s66 = sphi 0, %s64
    %s67 = sphi 0, %s66
    %s81 = sphi 0, %s67
    %s87 = sphi 0, %s89
    %s90 = sphi 0, %s87
    %s91 = sphi 0, %s90
    %s107 = sphi 0, %s91
  $region4: #{encoder_forward.2} parent=0 // loop_header_branch
    %12 = sbr.rel (%p10) target = $region8
  $region5: #{encoder_forward.2} parent=0 // loop_body
    %s14 = ssub.s32 %s9, 1
    %s15 = ssub.s32 %s9, 2
    %s16 = sadd.s32 %s9, 1
    %s17 = ssub.s32 %s9, %s16
    %p18 = scmp.eq.s32.totalorder %s17, 0
    %s20 = sadd.s32 %s19, 1
    %s21 = scalar_select %p18, %s19, %s20
    %p24 = pneg %p18
    %p25 = scmp.eq.s32.totalorder %s9, 1
    %p26 = por %p24, %p25
    %p27 = scmp.ne.s32.totalorder %s19, %s22
    %p28 = scmp.eq.s32.totalorder %s9, 0
    %p29 = por %p27, %p28
    %p30 = scmp.ne.s32.totalorder %s19, %s22
    %p31 = scmp.eq.s32.totalorder %s14, 1
    %p32 = por %p30, %p31
    %p33 = scmp.ne.s32.totalorder %s22, %s23
    %p34 = scmp.eq.s32.totalorder %s14, 0
    %p35 = por %p33, %p34
    %p36 = scmp.ne.s32.totalorder %s22, %s23
    %p37 = scmp.eq.s32.totalorder %s15, 1
    %p38 = por %p36, %p37
    %p40 = scmp.ne.s32.totalorder %s23, %s39
    %p41 = scmp.eq.s32.totalorder %s15, 0
    %p42 = por %p40, %p41
    %s44 = sadd.s32 %s43, 1
    %p47 = scmp.eq.s32.totalorder %s9, 1
    %p48 = scmp.ne.s32.totalorder %s43, %s45
    %p49 = scmp.eq.s32.totalorder %s9, 0
    %p50 = por %p48, %p49
    %p51 = scmp.ne.s32.totalorder %s43, %s45
    %p52 = scmp.eq.s32.totalorder %s14, 1
    %p53 = por %p51, %p52
    %p54 = scmp.ne.s32.totalorder %s45, %s46
    %p55 = scmp.eq.s32.totalorder %s14, 0
    %p56 = por %p54, %p55
    %p57 = scmp.ne.s32.totalorder %s45, %s46
    %p58 = scmp.eq.s32.totalorder %s15, 1
    %p59 = por %p57, %p58
    %p61 = scmp.ne.s32.totalorder %s46, %s60
    %p62 = scmp.eq.s32.totalorder %s15, 0
    %p63 = por %p61, %p62
    %s65 = sadd.s32 %s64, 1
    %p68 = scmp.eq.s32.totalorder %s9, 1
    %p69 = scmp.ne.s32.totalorder %s64, %s66
    %p70 = scmp.eq.s32.totalorder %s9, 0
    %p71 = por %p69, %p70
    %p72 = scmp.ne.s32.totalorder %s64, %s66
    %p73 = scmp.eq.s32.totalorder %s14, 1
    %p74 = por %p72, %p73
    %p75 = scmp.ne.s32.totalorder %s66, %s67
    %p76 = scmp.eq.s32.totalorder %s14, 0
    %p77 = por %p75, %p76
    %p78 = scmp.ne.s32.totalorder %s66, %s67
    %p79 = scmp.eq.s32.totalorder %s15, 1
    %p80 = por %p78, %p79
    %p82 = scmp.ne.s32.totalorder %s67, %s81
    %p83 = scmp.eq.s32.totalorder %s15, 0
    %p84 = por %p82, %p83
    %s85 = ssub.s32 %s9, %s16
    %p86 = scmp.eq.s32.totalorder %s85, 0
    %s88 = sadd.s32 %s87, 1
    %s89 = scalar_select %p86, %s87, %s88
    %p92 = pneg %p86
    %p93 = scmp.eq.s32.totalorder %s9, 1
    %p94 = por %p92, %p93
    %p95 = scmp.ne.s32.totalorder %s87, %s90
    %p96 = scmp.eq.s32.totalorder %s9, 0
    %p97 = por %p95, %p96
    %p98 = scmp.ne.s32.totalorder %s87, %s90
    %p99 = scmp.eq.s32.totalorder %s14, 1
    %p100 = por %p98, %p99
    %p101 = scmp.ne.s32.totalorder %s90, %s91
    %p102 = scmp.eq.s32.totalorder %s14, 0
    %p103 = por %p101, %p102
    %p104 = scmp.ne.s32.totalorder %s90, %s91
    %p105 = scmp.eq.s32.totalorder %s15, 1
    %p106 = por %p104, %p105
    %p108 = scmp.ne.s32.totalorder %s91, %s107
    %p109 = scmp.eq.s32.totalorder %s15, 0
    %p110 = por %p108, %p109
    %p111 = scmp.le.s32.totalorder 1, %s9
    %p112 = scmp.lt.s32.totalorder %s9, 3
    %p113 = pnand %p111, %p112
    %p114 = pneg %p113
    // Predicated region
    $region9: #{encoder_forward.2} parent=5 // pred_check
      _
    $region10: #{encoder_forward.2} parent=5 // pred_check_branch
      %116 = sbr.rel (%p113) target = $region12
    $region11: #{encoder_forward.2} parent=5 // pred_region
      %s117 = ssub.s32 %s9, 1
      // Predicated region
      $region13: #{encoder_forward.2} parent=11 // pred_check
        %p118 = pneg %p56
      $region14: #{encoder_forward.2} parent=11 // pred_check_branch
        %120 = sbr.rel (%p118) target = $region16
      $region15: #{encoder_forward.2} parent=11 // pred_region
        _
      $region16: #{encoder_forward.2} parent=11 // pred_fallthru
        _
      // Predicated region
      $region17: #{encoder_forward.2} parent=11 // pred_check
        %p121 = pneg %p77
      $region18: #{encoder_forward.2} parent=11 // pred_check_branch
        %123 = sbr.rel (%p121) target = $region20
      $region19: #{encoder_forward.2} parent=11 // pred_region
        _
      $region20: #{encoder_forward.2} parent=11 // pred_fallthru
        _
    $region12: #{encoder_forward.2} parent=5 // pred_fallthru
      _
    %p124 = scmp.lt.s32.totalorder %s9, 2
    // Predicated region
    $region21: #{encoder_forward.2} parent=5 // pred_check
      %p125 = pneg %p124
    $region22: #{encoder_forward.2} parent=5 // pred_check_branch
      %127 = sbr.rel (%p125) target = $region24
    $region23: #{encoder_forward.2} parent=5 // pred_region
      // Predicated region
      $region25: #{encoder_forward.2} parent=23 // pred_check
        %p128 = pneg %p29
      $region26: #{encoder_forward.2} parent=23 // pred_check_branch
        %130 = sbr.rel (%p128) target = $region28
      $region27: #{encoder_forward.2} parent=23 // pred_region
        %p131 = scmp.lt.s32.totalorder %s9, 1
        %s132 = scalar_select %p131, %s9, 1
        %s133 = smul.addr %s132, 2
        %s134 = smul.addr %s133, 8
        %s135 = scalar_lea.vmem %s0, %s134
      $region28: #{encoder_forward.2} parent=23 // pred_fallthru
        _
    $region24: #{encoder_forward.2} parent=5 // pred_fallthru
      _
    %p136 = scmp.le.s32.totalorder 1, %s9
    %p137 = scmp.lt.s32.totalorder %s9, 3
    %p138 = pnand %p136, %p137
    %p139 = pneg %p138
    // Predicated region
    $region29: #{encoder_forward.2} parent=5 // pred_check
      _
    $region30: #{encoder_forward.2} parent=5 // pred_check_branch
      %141 = sbr.rel (%p138) target = $region32
    $region31: #{encoder_forward.2} parent=5 // pred_region
      %s142 = ssub.s32 %s9, 1
      %p143 = scmp.lt.s32.totalorder %s14, 1
      %s144 = scalar_select %p143, %s14, 1
      %s145 = smul.addr %s144, 2
      %s146 = smul.addr %s145, 8
      %s147 = scalar_lea.vmem %s0, %s146
      %p148 = pneg %p35
      %p149 = pneg %p32
      %p150 = pneg %p56
      %p151 = pneg %p53
      %p152 = pneg %p77
      %p153 = pneg %p74
      %p154 = pneg %p103
      %p155 = pneg %p100
      %p156 = scmp.lt.s32.totalorder %s14, 1
      %s157 = scalar_select %p156, %s14, 1
      %s158 = smul.addr %s157, 8
      %s159 = scalar_lea.vmem %s3, %s158
      %p160 = scmp.lt.s32.totalorder %s14, 1
      %s161 = scalar_select %p160, %s14, 1
      %s162 = smul.addr %s161, 2
      %s163 = smul.addr %s162, 8
      %s164 = scalar_lea.vmem %s0, %s163
      %p165 = scmp.lt.s32.totalorder %s14, 1
      %s166 = scalar_select %p165, %s14, 1
      %s167 = smul.addr %s166, 8
      %s168 = scalar_lea.vmem %s3, %s167
      %v169 = vld [vmem:[%s164] sm:$0xff]
      %v170 = vld [vmem:[%s164 + $0x8] sm:$0xff]
      %v171 = vld [vmem:[%s1] sm:$0xff]
      %vm172 = vcmask 130048
      %v174 = vsel %vm172, %v171, 0
      %v177 = vsel %vm172, %v169, 0
      %v180 = vsel %vm172, %v170, 0
      %182 = vmatprep.subr.mxu0 0.0
      %183 = vmatpush1.xpose.msra.mxu0 0.0
      %184 = vmatprep.subr.mxu0 0.0
      %185 = vmatpush1.xpose.msra.mxu0 0.0
      %186 = vmatprep.subr.mxu0 0.0
      %187 = vmatpush1.xpose.msra.mxu0 0.0
      %188 = vmatprep.subr.mxu0 0.0
      %189 = vmatpush1.xpose.msra.mxu0 0.0
      %190 = vmatprep.subr.mxu0 0.0
      %191 = vmatpush1.xpose.msra.mxu0 0.0
      %192 = vmatprep.subr.mxu0 0.0
      %193 = vmatpush1.xpose.msra.mxu0 0.0
      %194 = vmatprep.subr.mxu0 0.0
      %195 = vmatpush1.xpose.msra.mxu0 0.0
      %196 = vmatprep.subr.mxu0 0.0
      %197 = vmatpush1.xpose.msra.mxu0 0.0
      %198 = vmatprep.subr.mxu0 0.0
      %199 = vmatpush1.xpose.msra.mxu0 0.0
      %200 = vmatprep.subr.mxu0 0.0
      %201 = vmatpush1.xpose.msra.mxu0 0.0
      %202 = vmatprep.subr.mxu0 0.0
      %203 = vmatpush1.xpose.msra.mxu0 0.0
      %204 = vmatprep.subr.mxu0 0.0
      %205 = vmatpush1.xpose.msra.mxu0 0.0
      %206 = vmatprep.subr.mxu0 0.0
      %207 = vmatpush1.xpose.msra.mxu0 0.0
      %208 = vmatprep.subr.mxu0 0.0
      %209 = vmatpush1.xpose.msra.mxu0 0.0
      %210 = vmatprep.subr.mxu0 0.0
      %211 = vmatpush1.xpose.msra.mxu0 %v180
      %212 = vmatprep.subr.mxu0 0.0
      %213 = vmatpush1.xpose.msra.mxu0 %v177
      %214 = vmatprep.subr.mxu0 0.0
      %215 = vmatpush2.xpose.msra.mxu0 0.0
      %216 = vmatprep.subr.mxu0 0.0
      %217 = vmatpush2.xpose.msra.mxu0 0.0
      %218 = vmatprep.subr.mxu0 0.0
      %219 = vmatpush2.xpose.msra.mxu0 0.0
      %220 = vmatprep.subr.mxu0 0.0
      %221 = vmatpush2.xpose.msra.mxu0 0.0
      %222 = vmatprep.subr.mxu0 0.0
      %223 = vmatpush2.xpose.msra.mxu0 0.0
      %224 = vmatprep.subr.mxu0 0.0
      %225 = vmatpush2.xpose.msra.mxu0 0.0
      %226 = vmatprep.subr.mxu0 0.0
      %227 = vmatpush2.xpose.msra.mxu0 0.0
      %228 = vmatprep.subr.mxu0 0.0
      %229 = vmatpush2.xpose.msra.mxu0 0.0
      %230 = vmatprep.subr.mxu0 0.0
      %231 = vmatpush2.xpose.msra.mxu0 0.0
      %232 = vmatprep.subr.mxu0 0.0
      %233 = vmatpush2.xpose.msra.mxu0 0.0
      %234 = vmatprep.subr.mxu0 0.0
      %235 = vmatpush2.xpose.msra.mxu0 0.0
      %236 = vmatprep.subr.mxu0 0.0
      %237 = vmatpush2.xpose.msra.mxu0 0.0
      %238 = vmatprep.subr.mxu0 0.0
      %239 = vmatpush2.xpose.msra.mxu0 0.0
      %240 = vmatprep.subr.mxu0 0.0
      %241 = vmatpush2.xpose.msra.mxu0 0.0
      %242 = vmatprep.subr.mxu0 0.0
      %243 = vmatpush2.xpose.msra.mxu0 0.0
      %244 = vmatprep.subr.mxu0 0.0
      %245 = vmatpush2.xpose.msra.mxu0 0.0
      %246 = vmatprep.mubr.f32.mxu0 0.0
      %247 = vmatmul.mubr.f32.gmra.mxu0 %v174
      %v248 = vpop.f32.mrf.mxu0
      %v249 = vadd.f32 0.0, %v248
      %v250 = vpop.f32.mrf.mxu0
      %251 = vdwg.mxu0
      %v252 = vld [vmem:[%s2] sm:$0xff]
      %254 = vset.pattern.permute.xlu0 0
      %255 = vperm.xlu0 %254, %v252
      %v256 = vpop.permute.xlu0 %255
      %v258 = vmul.f32 %v249, %v256
      %vm259 = vcmask 1047680
      %260 = vrot.lane.b32.xlu0 %v249, 16
      %v261 = vpop.permute.xlu0 %260
      %v262 = vsel %vm259, %v261, %v249
      %263 = vrot.lane.b32.xlu0 %v262, 16
      %v264 = vpop.permute.xlu0 %263
      %v265 = vsel %vm259, %v264, %v249
      %266 = vset.pattern.permute.xlu0 1
      %267 = vperm.xlu0 %266, %v252
      %v268 = vpop.permute.xlu0 %267
      %v270 = vmul.f32 %v265, %v268
      %272 = vrot.lane.b32.xlu0 %v270, 127
      %v273 = vpop.permute.xlu0 %272
      %v275 = vadd.f32 %v258, %v273
      %276 = vset.pattern.permute.xlu0 2
      %277 = vperm.xlu0 %276, %v252
      %v278 = vpop.permute.xlu0 %277
      %v280 = vmul.f32 %v265, %v278
      %282 = vrot.lane.b32.xlu0 %v280, 126
      %v283 = vpop.permute.xlu0 %282
      %v285 = vadd.f32 %v275, %v283
      %286 = vset.pattern.permute.xlu0 3
      %287 = vperm.xlu0 %286, %v252
      %v288 = vpop.permute.xlu0 %287
      %v290 = vmul.f32 %v265, %v288
      %292 = vrot.lane.b32.xlu0 %v290, 125
      %v293 = vpop.permute.xlu0 %292
      %v295 = vadd.f32 %v285, %v293
      %v296 = vmax.f32 %v295, 0.0
      %vm297 = vcmp.ne.f32.partialorder %v295, %v295
      %v298 = vadd.f32 %v295, 0.0
      %v299 = vand.u32 2147483647, %v295
      %v300 = vsub.f32 0.0, %v299
      %v301 = vmul.f32 %v300, 1.442695
      %v302 = vpow.pop %v301
      %v303 = vadd.f32 %v302, 1.0
      %v304 = vlog2.pop %v303
      %v305 = vmul.f32 %v304, 0.6931472
      %v306 = vmul.f32 -0.5, %v302
      %v307 = vadd.f32 %v306, 1.0
      %v308 = vmul.f32 %v307, %v302
      %v309 = vand.u32 2147483647, %v302
      %vm310 = vcmp.lt.f32.partialorder %v309, 0.0004427343
      %v311 = vsel %vm310, %v308, %v305
      %v312 = vadd.f32 %v296, %v311
      %v313 = vsel %vm297, %v298, %v312
      %vm314 = vcmask 105472
      %315 = vst.msk [vmem:[%s168] sm:$0xff] %vm314, %v313
      %p316 = scmp.lt.s32.totalorder %s14, 1
      %s317 = scalar_select %p316, %s14, 1
      %s318 = smul.addr %s317, 8
      %s319 = scalar_lea.vmem %s3, %s318
      // Predicated region
      $region33: #{encoder_forward.2} parent=31 // pred_check
        %p320 = pneg %p100
      $region34: #{encoder_forward.2} parent=31 // pred_check_branch
        %322 = sbr.rel (%p320) target = $region36
      $region35: #{encoder_forward.2} parent=31 // pred_region
        _
      $region36: #{encoder_forward.2} parent=31 // pred_fallthru
        _
    $region32: #{encoder_forward.2} parent=5 // pred_fallthru
      _
    %p323 = scmp.le.s32.totalorder 2, %s9
    // Predicated region
    $region37: #{encoder_forward.2} parent=5 // pred_check
      %p324 = pneg %p323
    $region38: #{encoder_forward.2} parent=5 // pred_check_branch
      %326 = sbr.rel (%p324) target = $region40
    $region39: #{encoder_forward.2} parent=5 // pred_region
      %s327 = ssub.s32 %s9, 2
      // Predicated region
      $region41: #{encoder_forward.2} parent=39 // pred_check
        %p328 = pneg %p106
      $region42: #{encoder_forward.2} parent=39 // pred_check_branch
        %330 = sbr.rel (%p328) target = $region44
      $region43: #{encoder_forward.2} parent=39 // pred_region
        %p331 = scmp.lt.s32.totalorder %s15, 1
        %s332 = scalar_select %p331, %s15, 1
        %s333 = smul.addr %s332, 8
        %s334 = scalar_lea.vmem %s3, %s333
      $region44: #{encoder_forward.2} parent=39 // pred_fallthru
        _
    $region40: #{encoder_forward.2} parent=5 // pred_fallthru
      _
  $region6: #{encoder_forward.2} parent=0 // loop_footer
    %s13 = sadd.s32 1, %s9
  $region7: #{encoder_forward.2} parent=0 // loop_footer_branch
    %8 = sbr.rel target = $region3
  $region8: #{encoder_forward.2} parent=0 // loop_exit
    _

// kernel: encoder_forward.3
$region0: #{encoder_forward.3}
  #allocation0 [shape = 'u32[]', space=smem, size = 0x4, offset = 0x4, fixed_abs, tag = 'smem constant byte address 0x4 - core index']
  #allocation1 [shape = 'u32[144,128]{1,0:T(1,128)}', space=vmem, size = 0x12000, scoped, tag = 'internal scratch']
  %s0 = inlined_call_operand.vmem [shape: f32[2,8,13], index: 0, kind: input, shape index: {}]
  %s1 = inlined_call_operand.vmem [shape: f32[2,8,13], index: 1, kind: input, shape index: {}]
  %s2 = inlined_call_operand.vmem [shape: f32[16,8], index: 2, kind: input, shape index: {}]
  %s3 = inlined_call_operand.hbm [shape: f32[2,16,13], index: 3, kind: output, shape index: {0}]
  %s4 = inlined_call_operand.vmem [shape: f32[2,1,1], index: 4, kind: output, shape index: {1}]
  %5 = xla_tuple %s3, %s4
  %s6 = sld [smem:[#allocation0]]
  $region53: #{encoder_forward.3} parent=0
    _
  %s8 = ssub.s32 1, %s6
  %s9 = scalar_select 0, %s8, %s6
  $region1: #{encoder_forward.3} parent=0
    #allocation2 [shape = 'u8[16384]{0}', space=vmem, size = 0x4000, scoped, tag = 'output window, operand 0']
    #allocation3 [shape = 's32[2]{0}', space=sflag, size = 0x8, scoped, tag = 'scoped memory for encoder_forward.3']
    %10 = vsyncpa [#allocation3], 0
    %s11 = scalar_lea.sflag [#allocation3], 1
    %12 = vsyncpa %s11, 0
    loop: start=0, step=1, limit=4
    $region2: #{encoder_forward.3} parent=1 // loop_pre_header
      _
    $region3: #{encoder_forward.3} parent=1 // loop_header
      %s14 = sphi 0, %s18
      %p15 = scmp.ge.s32.totalorder %s14, 4
      %s24 = sphi 0, %s26
      %s27 = sphi 0, %s24
      %s28 = sphi 0, %s27
      %s44 = sphi 0, %s28
      %s50 = sphi 0, %s52
      %s53 = sphi 0, %s50
      %s54 = sphi 0, %s53
      %s70 = sphi 0, %s54
      %s74 = sphi 0, %s74
      %s76 = sphi 0, %s74
      %s77 = sphi 0, %s76
      %s91 = sphi 0, %s77
      %s97 = sphi 0, %s99
      %s100 = sphi 0, %s97
      %s101 = sphi 0, %s100
      %s117 = sphi 0, %s101
      %s123 = sphi 0, %s125
      %s126 = sphi 0, %s123
      %s127 = sphi 0, %s126
      %s143 = sphi 0, %s127
    $region4: #{encoder_forward.3} parent=1 // loop_header_branch
      %17 = sbr.rel (%p15) target = $region8
    $region5: #{encoder_forward.3} parent=1 // loop_body
      %s19 = ssub.s32 %s14, 1
      %s20 = ssub.s32 %s14, 2
      %s21 = sadd.s32 %s14, 1
      %s22 = ssub.s32 %s14, %s21
      %p23 = scmp.eq.s32.totalorder %s22, 0
      %s25 = sadd.s32 %s24, 1
      %s26 = scalar_select %p23, %s24, %s25
      %p29 = pneg %p23
      %p30 = scmp.eq.s32.totalorder %s14, 1
      %p31 = por %p29, %p30
      %p32 = scmp.ne.s32.totalorder %s24, %s27
      %p33 = scmp.eq.s32.totalorder %s14, 0
      %p34 = por %p32, %p33
      %p35 = scmp.ne.s32.totalorder %s24, %s27
      %p36 = scmp.eq.s32.totalorder %s19, 1
      %p37 = por %p35, %p36
      %p38 = scmp.ne.s32.totalorder %s27, %s28
      %p39 = scmp.eq.s32.totalorder %s19, 0
      %p40 = por %p38, %p39
      %p41 = scmp.ne.s32.totalorder %s27, %s28
      %p42 = scmp.eq.s32.totalorder %s20, 1
      %p43 = por %p41, %p42
      %p45 = scmp.ne.s32.totalorder %s28, %s44
      %p46 = scmp.eq.s32.totalorder %s20, 0
      %p47 = por %p45, %p46
      %s48 = ssub.s32 %s14, %s21
      %p49 = scmp.eq.s32.totalorder %s48, 0
      %s51 = sadd.s32 %s50, 1
      %s52 = scalar_select %p49, %s50, %s51
      %p55 = pneg %p49
      %p56 = scmp.eq.s32.totalorder %s14, 1
      %p57 = por %p55, %p56
      %p58 = scmp.ne.s32.totalorder %s50, %s53
      %p59 = scmp.eq.s32.totalorder %s14, 0
      %p60 = por %p58, %p59
      %p61 = scmp.ne.s32.totalorder %s50, %s53
      %p62 = scmp.eq.s32.totalorder %s19, 1
      %p63 = por %p61, %p62
      %p64 = scmp.ne.s32.totalorder %s53, %s54
      %p65 = scmp.eq.s32.totalorder %s19, 0
      %p66 = por %p64, %p65
      %p67 = scmp.ne.s32.totalorder %s53, %s54
      %p68 = scmp.eq.s32.totalorder %s20, 1
      %p69 = por %p67, %p68
      %p71 = scmp.ne.s32.totalorder %s54, %s70
      %p72 = scmp.eq.s32.totalorder %s20, 0
      %p73 = por %p71, %p72
      %s75 = sadd.s32 %s74, 1
      %p78 = scmp.eq.s32.totalorder %s14, 1
      %p79 = scmp.ne.s32.totalorder %s74, %s76
      %p80 = scmp.eq.s32.totalorder %s14, 0
      %p81 = por %p79, %p80
      %p82 = scmp.ne.s32.totalorder %s74, %s76
      %p83 = scmp.eq.s32.totalorder %s19, 1
      %p84 = por %p82, %p83
      %p85 = scmp.ne.s32.totalorder %s76, %s77
      %p86 = scmp.eq.s32.totalorder %s19, 0
      %p87 = por %p85, %p86
      %p88 = scmp.ne.s32.totalorder %s76, %s77
      %p89 = scmp.eq.s32.totalorder %s20, 1
      %p90 = por %p88, %p89
      %p92 = scmp.ne.s32.totalorder %s77, %s91
      %p93 = scmp.eq.s32.totalorder %s20, 0
      %p94 = por %p92, %p93
      %s95 = ssub.s32 %s14, %s21
      %p96 = scmp.eq.s32.totalorder %s95, 0
      %s98 = sadd.s32 %s97, 1
      %s99 = scalar_select %p96, %s97, %s98
      %p102 = pneg %p96
      %p103 = scmp.eq.s32.totalorder %s14, 1
      %p104 = por %p102, %p103
      %p105 = scmp.ne.s32.totalorder %s97, %s100
      %p106 = scmp.eq.s32.totalorder %s14, 0
      %p107 = por %p105, %p106
      %p108 = scmp.ne.s32.totalorder %s97, %s100
      %p109 = scmp.eq.s32.totalorder %s19, 1
      %p110 = por %p108, %p109
      %p111 = scmp.ne.s32.totalorder %s100, %s101
      %p112 = scmp.eq.s32.totalorder %s19, 0
      %p113 = por %p111, %p112
      %p114 = scmp.ne.s32.totalorder %s100, %s101
      %p115 = scmp.eq.s32.totalorder %s20, 1
      %p116 = por %p114, %p115
      %p118 = scmp.ne.s32.totalorder %s101, %s117
      %p119 = scmp.eq.s32.totalorder %s20, 0
      %p120 = por %p118, %p119
      %s121 = ssub.s32 %s14, %s21
      %p122 = scmp.eq.s32.totalorder %s121, 0
      %s124 = sadd.s32 %s123, 1
      %s125 = scalar_select %p122, %s123, %s124
      %p128 = pneg %p122
      %p129 = scmp.eq.s32.totalorder %s14, 1
      %p130 = por %p128, %p129
      %p131 = scmp.ne.s32.totalorder %s123, %s126
      %p132 = scmp.eq.s32.totalorder %s14, 0
      %p133 = por %p131, %p132
      %p134 = scmp.ne.s32.totalorder %s123, %s126
      %p135 = scmp.eq.s32.totalorder %s19, 1
      %p136 = por %p134, %p135
      %p137 = scmp.ne.s32.totalorder %s126, %s127
      %p138 = scmp.eq.s32.totalorder %s19, 0
      %p139 = por %p137, %p138
      %p140 = scmp.ne.s32.totalorder %s126, %s127
      %p141 = scmp.eq.s32.totalorder %s20, 1
      %p142 = por %p140, %p141
      %p144 = scmp.ne.s32.totalorder %s127, %s143
      %p145 = scmp.eq.s32.totalorder %s20, 0
      %p146 = por %p144, %p145
      %p147 = scmp.le.s32.totalorder 1, %s14
      %p148 = scmp.lt.s32.totalorder %s14, 3
      %p149 = pnand %p147, %p148
      %p150 = pneg %p149
      // Predicated region
      $region9: #{encoder_forward.3} parent=5 // pred_check
        _
      $region10: #{encoder_forward.3} parent=5 // pred_check_branch
        %152 = sbr.rel (%p149) target = $region12
      $region11: #{encoder_forward.3} parent=5 // pred_region
        %s153 = ssub.s32 %s14, 1
        // Predicated region
        $region13: #{encoder_forward.3} parent=11 // pred_check
          %p154 = pneg %p87
        $region14: #{encoder_forward.3} parent=11 // pred_check_branch
          %156 = sbr.rel (%p154) target = $region16
        $region15: #{encoder_forward.3} parent=11 // pred_region
          _
        $region16: #{encoder_forward.3} parent=11 // pred_fallthru
          _
      $region12: #{encoder_forward.3} parent=5 // pred_fallthru
        _
      %p157 = scmp.lt.s32.totalorder %s14, 2
      // Predicated region
      $region17: #{encoder_forward.3} parent=5 // pred_check
        %p158 = pneg %p157
      $region18: #{encoder_forward.3} parent=5 // pred_check_branch
        %160 = sbr.rel (%p158) target = $region20
      $region19: #{encoder_forward.3} parent=5 // pred_region
        // Predicated region
        $region21: #{encoder_forward.3} parent=19 // pred_check
          %p161 = pneg %p34
        $region22: #{encoder_forward.3} parent=19 // pred_check_branch
          %163 = sbr.rel (%p161) target = $region24
        $region23: #{encoder_forward.3} parent=19 // pred_region
          %p164 = scmp.lt.s32.totalorder %s14, 1
          %s165 = scalar_select %p164, %s14, 1
          %s166 = smul.addr %s165, 8
          %s167 = scalar_lea.vmem %s0, %s166
        $region24: #{encoder_forward.3} parent=19 // pred_fallthru
          _
        // Predicated region
        $region25: #{encoder_forward.3} parent=19 // pred_check
          %p168 = pneg %p60
        $region26: #{encoder_forward.3} parent=19 // pred_check_branch
          %170 = sbr.rel (%p168) target = $region28
        $region27: #{encoder_forward.3} parent=19 // pred_region
          %p171 = scmp.lt.s32.totalorder %s14, 1
          %s172 = scalar_select %p171, %s14, 1
          %s173 = smul.addr %s172, 8
          %s174 = scalar_lea.vmem %s1, %s173
        $region28: #{encoder_forward.3} parent=19 // pred_fallthru
          _
      $region20: #{encoder_forward.3} parent=5 // pred_fallthru
        _
      %p175 = scmp.le.s32.totalorder 1, %s14
      %p176 = scmp.lt.s32.totalorder %s14, 3
      %p177 = pnand %p175, %p176
      %p178 = pneg %p177
      // Predicated region
      $region29: #{encoder_forward.3} parent=5 // pred_check
        _
      $region30: #{encoder_forward.3} parent=5 // pred_check_branch
        %180 = sbr.rel (%p177) target = $region32
      $region31: #{encoder_forward.3} parent=5 // pred_region
        %s181 = ssub.s32 %s14, 1
        %p182 = scmp.lt.s32.totalorder %s19, 1
        %s183 = scalar_select %p182, %s19, 1
        %s184 = smul.addr %s183, 8
        %s185 = scalar_lea.vmem %s0, %s184
        %p186 = pneg %p40
        %p187 = pneg %p37
        %p188 = scmp.lt.s32.totalorder %s19, 1
        %s189 = scalar_select %p188, %s19, 1
        %s190 = smul.addr %s189, 8
        %s191 = scalar_lea.vmem %s1, %s190
        %p192 = pneg %p66
        %p193 = pneg %p63
        %p194 = pneg %p87
        %p195 = pneg %p84
        %p196 = pneg %p113
        %p197 = pneg %p110
        %s198 = sand.u32 %s100, 1
        %s199 = scalar_lea.sflag [#allocation3], %s198
        %s200 = sand.u32 %s100, 1
        %s201 = smul.addr %s200, 16
        %s202 = scalar_lea.vmem [#allocation2], %s201
        %p203 = pneg %p139
        %p204 = pneg %p136
        %p205 = scmp.lt.s32.totalorder %s19, 1
        %s206 = scalar_select %p205, %s19, 1
        %s207 = scalar_lea.vmem %s4, %s206
        %p208 = scmp.lt.s32.totalorder %s19, 1
        %s209 = scalar_select %p208, %s19, 1
        %s210 = smul.addr %s209, 8
        %s211 = scalar_lea.vmem %s0, %s210
        %p212 = scmp.lt.s32.totalorder %s19, 1
        %s213 = scalar_select %p212, %s19, 1
        %s214 = smul.addr %s213, 8
        %s215 = scalar_lea.vmem %s1, %s214
        %p216 = scmp.lt.s32.totalorder %s19, 1
        %s217 = scalar_select %p216, %s19, 1
        %s218 = scalar_lea.vmem %s4, %s217
        %v219 = vld [vmem:[%s211] sm:$0xff]
        %v220 = vld [vmem:[%s215] sm:$0xff]
        %v221 = vadd.f32 %v219, %v220
        %v222 = vld [vmem:[%s2] sm:$0xff]
        %v223 = vld [vmem:[%s2 + $0x8] sm:$0xff]
        %vm224 = vcmask 64512
        %v226 = vsel %vm224, %v222, 0
        %v229 = vsel %vm224, %v223, 0
        %231 = vmatprep.subr.mxu0 0.0
        %232 = vmatpush1.msra.mxu0 0.0
        %233 = vmatprep.subr.mxu0 0.0
        %234 = vmatpush1.msra.mxu0 0.0
        %235 = vmatprep.subr.mxu0 0.0
        %236 = vmatpush1.msra.mxu0 0.0
        %237 = vmatprep.subr.mxu0 0.0
        %238 = vmatpush1.msra.mxu0 0.0
        %239 = vmatprep.subr.mxu0 0.0
        %240 = vmatpush1.msra.mxu0 0.0
        %241 = vmatprep.subr.mxu0 0.0
        %242 = vmatpush1.msra.mxu0 0.0
        %243 = vmatprep.subr.mxu0 0.0
        %244 = vmatpush1.msra.mxu0 0.0
        %245 = vmatprep.subr.mxu0 0.0
        %246 = vmatpush1.msra.mxu0 0.0
        %247 = vmatprep.subr.mxu0 0.0
        %248 = vmatpush1.msra.mxu0 0.0
        %249 = vmatprep.subr.mxu0 0.0
        %250 = vmatpush1.msra.mxu0 0.0
        %251 = vmatprep.subr.mxu0 0.0
        %252 = vmatpush1.msra.mxu0 0.0
        %253 = vmatprep.subr.mxu0 0.0
        %254 = vmatpush1.msra.mxu0 0.0
        %255 = vmatprep.subr.mxu0 0.0
        %256 = vmatpush1.msra.mxu0 0.0
        %257 = vmatprep.subr.mxu0 0.0
        %258 = vmatpush1.msra.mxu0 0.0
        %259 = vmatprep.subr.mxu0 0.0
        %260 = vmatpush1.msra.mxu0 0.0
        %261 = vmatprep.subr.mxu0 0.0
        %262 = vmatpush1.msra.mxu0 %v221
        %263 = vmatprep.subr.mxu0 0.0
        %264 = vmatpush2.msra.mxu0 0.0
        %265 = vmatprep.subr.mxu0 0.0
        %266 = vmatpush2.msra.mxu0 0.0
        %267 = vmatprep.subr.mxu0 0.0
        %268 = vmatpush2.msra.mxu0 0.0
        %269 = vmatprep.subr.mxu0 0.0
        %270 = vmatpush2.msra.mxu0 0.0
        %271 = vmatprep.subr.mxu0 0.0
        %272 = vmatpush2.msra.mxu0 0.0
        %273 = vmatprep.subr.mxu0 0.0
        %274 = vmatpush2.msra.mxu0 0.0
        %275 = vmatprep.subr.mxu0 0.0
        %276 = vmatpush2.msra.mxu0 0.0
        %277 = vmatprep.subr.mxu0 0.0
        %278 = vmatpush2.msra.mxu0 0.0
        %279 = vmatprep.subr.mxu0 0.0
        %280 = vmatpush2.msra.mxu0 0.0
        %281 = vmatprep.subr.mxu0 0.0
        %282 = vmatpush2.msra.mxu0 0.0
        %283 = vmatprep.subr.mxu0 0.0
        %284 = vmatpush2.msra.mxu0 0.0
        %285 = vmatprep.subr.mxu0 0.0
        %286 = vmatpush2.msra.mxu0 0.0
        %287 = vmatprep.subr.mxu0 0.0
        %288 = vmatpush2.msra.mxu0 0.0
        %289 = vmatprep.subr.mxu0 0.0
        %290 = vmatpush2.msra.mxu0 0.0
        %291 = vmatprep.subr.mxu0 0.0
        %292 = vmatpush2.msra.mxu0 0.0
        %293 = vmatprep.subr.mxu0 0.0
        %294 = vmatpush2.msra.mxu0 0.0
        %295 = vmatprep.mubr.f32.mxu0 0.0
        %296 = vmatmul.mubr.f32.gmra.mxu0 %v226
        %v297 = vpop.f32.mrf.mxu0
        %v298 = vadd.f32 0.0, %v297
        %v299 = vpop.f32.mrf.mxu0
        %300 = vmatprep.mubr.f32.mxu0 0.0
        %301 = vmatmul.mubr.f32.gmra.mxu0 %v229
        %v302 = vpop.f32.mrf.mxu0
        %v303 = vadd.f32 0.0, %v302
        %v304 = vpop.f32.mrf.mxu0
        %305 = vdwg.mxu0
        %vm306 = vcmask 105472
        %307 = vst.msk [vmem:[%s202] sm:$0xff] %vm306, %v298
        %308 = vst.msk [vmem:[%s202 + $0x8] sm:$0xff] %vm306, %v303
        %v309 = vand.u32 2147483647, %v221
        %v310 = vsel %vm306, %v309, 0.0
        %311 = vadd.xlane.f32.xlu0 %v310
        %v312 = vpop.xlane.xlu0 %311
        %v313 = vrot.slane %v312, 4
        %v314 = vadd.f32 %v312, %v313
        %v315 = vrot.slane %v314, 2
        %v316 = vadd.f32 %v314, %v315
        %v317 = vrot.slane %v316, 1
        %v318 = vadd.f32 %v316, %v317
        %s319 = vtos %v318
        %v320 = vstv %s319
        %vm321 = vcmask 0
        %322 = vst.msk [vmem:[%s218] sm:$0x1] %vm321, %v320
        %s323 = sand.u32 %s100, 1
        %s324 = scalar_lea.sflag [#allocation3], %s323
        %s325 = sand.u32 %s100, 1
        %s326 = smul.addr %s325, 16
        %s327 = scalar_lea.vmem [#allocation2], %s326
        %p328 = scmp.lt.s32.totalorder %s19, 1
        %s329 = scalar_select %p328, %s19, 1
        %s330 = scalar_lea.vmem %s4, %s329
        // Predicated region
        $region33: #{encoder_forward.3} parent=31 // pred_check
          %p331 = pneg %p110
        $region34: #{encoder_forward.3} parent=31 // pred_check_branch
          %333 = sbr.rel (%p331) target = $region36
        $region35: #{encoder_forward.3} parent=31 // pred_region
          %s335 = ssub.s32 256, 256
          %336 = vsyncadd %s324, %s335
          %s337 = smul.addr %s19, 2
          %s338 = smul.addr %s337, 128
          %s339 = scalar_lea.hbm %s3, %s338
          %s340 = sshll.u32 %s327, 4
          %s341 = int_to_ptr.vmem [resolvable:$true] %s340
          %346 = dma.vmem_to_hbm [thread:$0]  %s341, 256, %s339, %s324, 128, 128, 8
        $region36: #{encoder_forward.3} parent=31 // pred_fallthru
          _
        // Predicated region
        $region37: #{encoder_forward.3} parent=31 // pred_check
          %p347 = pneg %p136
        $region38: #{encoder_forward.3} parent=31 // pred_check_branch
          %349 = sbr.rel (%p347) target = $region40
        $region39: #{encoder_forward.3} parent=31 // pred_region
          _
        $region40: #{encoder_forward.3} parent=31 // pred_fallthru
          _
      $region32: #{encoder_forward.3} parent=5 // pred_fallthru
        _
      %p350 = scmp.le.s32.totalorder 2, %s14
      // Predicated region
      $region41: #{encoder_forward.3} parent=5 // pred_check
        %p351 = pneg %p350
      $region42: #{encoder_forward.3} parent=5 // pred_check_branch
        %353 = sbr.rel (%p351) target = $region44
      $region43: #{encoder_forward.3} parent=5 // pred_region
        %s354 = ssub.s32 %s14, 2
        // Predicated region
        $region45: #{encoder_forward.3} parent=43 // pred_check
          %p355 = pneg %p116
        $region46: #{encoder_forward.3} parent=43 // pred_check_branch
          %357 = sbr.rel (%p355) target = $region48
        $region47: #{encoder_forward.3} parent=43 // pred_region
          %s358 = sand.u32 %s101, 1
          %s359 = scalar_lea.sflag [#allocation3], %s358
          %s360 = sand.u32 %s101, 1
          %s361 = smul.addr %s360, 16
          %s362 = scalar_lea.vmem [#allocation2], %s361
          %363 = dma.done %s359, 256
        $region48: #{encoder_forward.3} parent=43 // pred_fallthru
          _
        // Predicated region
        $region49: #{encoder_forward.3} parent=43 // pred_check
          %p364 = pneg %p142
        $region50: #{encoder_forward.3} parent=43 // pred_check_branch
          %366 = sbr.rel (%p364) target = $region52
        $region51: #{encoder_forward.3} parent=43 // pred_region
          %p367 = scmp.lt.s32.totalorder %s20, 1
          %s368 = scalar_select %p367, %s20, 1
          %s369 = scalar_lea.vmem %s4, %s368
        $region52: #{encoder_forward.3} parent=43 // pred_fallthru
          _
      $region44: #{encoder_forward.3} parent=5 // pred_fallthru
        _
    $region6: #{encoder_forward.3} parent=1 // loop_footer
      %s18 = sadd.s32 1, %s14
    $region7: #{encoder_forward.3} parent=1 // loop_footer_branch
      %13 = sbr.rel target = $region3
    $region8: #{encoder_forward.3} parent=1 // loop_exit
      _
    %370 = vsyncpa [#allocation3], 1
    %s371 = scalar_lea.sflag [#allocation3], 1
    %372 = vsyncpa %s371, 1

</llo_original>
